<compile_context>
chip_gen: v6e
topology: v6e:2x2x1
jax: 0.10.0
libtpu: 0.0.40
codegen_flags: <defaults>
</compile_context>

<pallas_src>
import functools

import jax
import jax.numpy as jnp
from jax.experimental import pallas as pl
from jax.experimental.pallas import tpu as pltpu

EPS = 1e-5
_MiB = 1024 * 1024


def adabn_seq_kernel(x_ref,   # (C, TL)    f32  activations (channels on sublanes, spatial on lanes)
                     w_ref,   # (L, C, C)  bf16 folded weights, rows = c_out, cols = c_in
                     b_ref,   # (L, C, 1)  f32  folded bias (per c_out, broadcast over lanes)
                     o_ref):  # (C, TL)    out  tile
    # Carry the activation chain in bf16: one up-front cast, f32 accumulation
    # on the MXU, add+ReLU in f32 (v5e-safe), fused down-cast per layer.
    x = x_ref[...].astype(jnp.bfloat16)              # (C, TL) bf16
    n_layers = w_ref.shape[0]

    def layer(wl, bl, xb):
        y = jnp.dot(wl, xb, preferred_element_type=jnp.float32)   # (C, TL) f32
        return jnp.maximum(y + bl, 0.0).astype(jnp.bfloat16)

    if n_layers <= 4:
        # Small static unroll: gives the LLO scheduler full visibility.
        for l in range(n_layers):
            x = layer(w_ref[l], b_ref[l], x)
    else:
        # Deep stacks: bound live ranges with a real loop + dynamic ref index.
        x = jax.lax.fori_loop(
            0, n_layers, lambda l, xb: layer(w_ref[l], b_ref[l], xb), x)

    o_ref[...] = x.astype(o_ref.dtype)


def _round_up(x: int, m: int) -> int:
    return (x + m - 1) // m * m


def _vmem_capacity_bytes() -> int:
    try:
        return int(pltpu.get_tpu_info().vmem_capacity_bytes)
    except Exception:
        return 64 * _MiB  # conservative fallback (v7x per-TC VMEM)


def _plan(n: int, c: int, hw: int, n_layers: int, out_bytes: int):
    """Generation-aware lane-tile / buffering / VMEM-limit planning."""
    cap = _vmem_capacity_bytes()
    budget = int(0.85 * cap)
    target = 1024 if cap >= 100 * _MiB else 512      # v5e/v6e: 1024, v7x: 512

    w_bytes = n_layers * c * c * 2                   # bf16 folded weights
    b_bytes = n_layers * c * 128 * 4                 # (L,C,1) bias lane-pads 1->128
    resident = w_bytes + b_bytes
    # Single-buffer the resident (constant index_map) stack when it is big
    # enough that a second pipeline copy would eat real VMEM (v7x hazard).
    wb_buffers = 1 if resident > 4 * _MiB else 2

    # Conservative per-lane-column VMEM cost (assume deepest x pipeline).
    x_buf_max = 3 if c <= 128 else 2
    per_lane = c * (4 * x_buf_max + 2 * out_bytes + 6)
    avail = max(budget - wb_buffers * resident, per_lane * 128)
    tl = min(target, avail // per_lane, _round_up(hw, 128))
    tl = max(128, int(tl) - int(tl) % 128)

    hw_pad = _round_up(hw, tl)
    # v7x has 2 TensorCores/chip: expose >= 2 parallel grid steps.
    while n * (hw_pad // tl) < 2 and tl > 128:
        tl = max(128, (tl // 2) - (tl // 2) % 128)
        hw_pad = _round_up(hw, tl)

    n_j = hw_pad // tl
    # Deeper activation pipelining only pays off with enough steps to hide DMA.
    x_buffers = 3 if (c <= 128 and n_j >= 4) else 2

    footprint = (wb_buffers * resident
                 + x_buffers * c * tl * 4            # input tiles (f32)
                 + 2 * c * tl * out_bytes            # output tiles
                 + c * tl * 6)                       # in-kernel f32 y + bf16 x
    vmem_limit = int(min(max(int(1.3 * footprint), 16 * _MiB),
                         int(0.875 * cap)))
    return tl, hw_pad, wb_buffers, x_buffers, vmem_limit


def _spec(shape, index_map, buffers):
    if buffers == 2:                                 # pipeline default
        return pl.BlockSpec(shape, index_map)
    return pl.BlockSpec(shape, index_map, pipeline_mode=pl.Buffered(buffers))


@functools.partial(jax.jit, static_argnames=("out_dtype",))
def multi_input_seq(x_nchw, class_id, weights, bn_mean, bn_var,
                    bn_gamma, bn_beta, *, out_dtype=jnp.float32):
    """weights: (L, Cin, Cout) = stacked PyTorch 1x1-conv weights transposed.
    bn_*: (num_classes, L, C).  class_id: traced int32 scalar."""
    N, C, H, W = x_nchw.shape
    HW = H * W
    L = weights.shape[0]
    out_bytes = jnp.dtype(out_dtype).itemsize

    # ---- per-class BN fold (once, O(L*C^2), traced class_id) ---------------
    cid = jnp.asarray(class_id, dtype=jnp.int32)
    gamma = jnp.take(bn_gamma, cid, axis=0)                    # (L, C)
    var = jnp.take(bn_var, cid, axis=0)
    mean = jnp.take(bn_mean, cid, axis=0)
    beta = jnp.take(bn_beta, cid, axis=0)
    scale = gamma * jax.lax.rsqrt(var + EPS)                   # (L, C)
    # y = relu( (W^T * scale) @ x + (beta - mean*scale) ), channels-first.
    w_eff = (jnp.transpose(weights, (0, 2, 1))                 # (L, Cout, Cin)
             * scale[:, :, None]).astype(jnp.bfloat16)
    bias = (beta - mean * scale)[:, :, None].astype(jnp.float32)   # (L, C, 1)

    # ---- planning + lane-dense layout (NCHW -> (N, C, HW), free reshape) ---
    tl, hw_pad, wb_buffers, x_buffers, vmem_limit = _plan(N, C, HW, L, out_bytes)

    x3 = x_nchw.reshape(N, C, HW).astype(jnp.float32)
    if hw_pad != HW:
        # Pad the lane axis so every store is full-lane; sliced off below.
        x3 = jnp.pad(x3, ((0, 0), (0, 0), (0, hw_pad - HW)))

    grid = (N, hw_pad // tl)

    out3 = pl.pallas_call(
        adabn_seq_kernel,
        out_shape=jax.ShapeDtypeStruct((N, C, hw_pad), out_dtype),
        grid=grid,
        in_specs=[
            # activations: one batch row, full channels, TL spatial lanes
            _spec((None, C, tl), lambda n, j: (n, 0, j), x_buffers),
            # folded weights / bias: resident every step (constant index_map)
            _spec((L, C, C), lambda n, j: (0, 0, 0), wb_buffers),
            _spec((L, C, 1), lambda n, j: (0, 0, 0), wb_buffers),
        ],
        out_specs=pl.BlockSpec((None, C, tl), lambda n, j: (n, 0, j)),
        compiler_params=pltpu.CompilerParams(
            dimension_semantics=("parallel", "parallel"),
            vmem_limit_bytes=vmem_limit),
        cost_estimate=pl.CostEstimate(
            flops=2 * N * hw_pad * C * C * L,
            transcendentals=0,
            bytes_accessed=N * C * hw_pad * (4 + out_bytes)
                           + L * C * C * 2 + L * C * 4),
    )(x3, w_eff, bias)

    if hw_pad != HW:
        out3 = out3[:, :, :HW]
    return out3.reshape(N, C, H, W)


def ref_forward(x_nchw, class_id, weights, bn_mean, bn_var, bn_gamma, bn_beta):
    """Pure-JAX f32 reference mirroring the PyTorch MultiIuputSeq forward."""
    N, C, H, W = x_nchw.shape
    x = jnp.transpose(x_nchw, (0, 2, 3, 1)).reshape(-1, C).astype(jnp.float32)
    for l in range(weights.shape[0]):
        x = x @ weights[l]
        x = ((x - bn_mean[class_id, l]) / jnp.sqrt(bn_var[class_id, l] + EPS)
             * bn_gamma[class_id, l] + bn_beta[class_id, l])
        x = jnp.maximum(x, 0.0)
    return jnp.transpose(x.reshape(N, H, W, C), (0, 3, 1, 2))


if __name__ == "__main__":
    # Small, deterministic problem: batch=2, channels=8, spatial=16x16,
    # 3 chained layers, 4 classes, class_id=2.
    N, C, H, W = 2, 8, 16, 16
    L, NUM_CLASSES = 3, 4
    CLASS_ID = 2

    key = jax.random.PRNGKey(0)
    k_x, k_w, k_m, k_v, k_g, k_b = jax.random.split(key, 6)

    x = jax.random.normal(k_x, (N, C, H, W), dtype=jnp.float32)
    weights = jax.random.normal(k_w, (L, C, C), dtype=jnp.float32) * 0.3
    bn_mean = jax.random.normal(k_m, (NUM_CLASSES, L, C), dtype=jnp.float32) * 0.1
    bn_var = jax.random.uniform(k_v, (NUM_CLASSES, L, C),
                                dtype=jnp.float32, minval=0.5, maxval=1.5)
    bn_gamma = 1.0 + 0.1 * jax.random.normal(k_g, (NUM_CLASSES, L, C),
                                             dtype=jnp.float32)
    bn_beta = 0.1 * jax.random.normal(k_b, (NUM_CLASSES, L, C),
                                      dtype=jnp.float32)

    out = multi_input_seq(x, CLASS_ID, weights, bn_mean, bn_var,
                          bn_gamma, bn_beta)
    out = jax.block_until_ready(out)

    ref = ref_forward(x, CLASS_ID, weights, bn_mean, bn_var, bn_gamma, bn_beta)
    assert out.shape == (N, C, H, W)
    # bf16 matmul operands / bf16 activation carry -> relaxed tolerance vs f32 ref.
    assert jnp.allclose(out, ref, rtol=5e-2, atol=5e-2), "mismatch vs reference"

    print("KERNEL_OK")
</pallas_src>

<mosaic_0001>
module attributes {stable_mosaic.version = 11 : i64} {
  func.func @adabn_seq_kernel(%arg0: i32, %arg1: i32, %arg2: memref<1x8x256xf32, #tpu.memory_space<vmem>>, %arg3: memref<3x8x8xbf16, #tpu.memory_space<vmem>>, %arg4: memref<3x8x1xf32, #tpu.memory_space<vmem>>, %arg5: memref<1x8x256xf32, #tpu.memory_space<vmem>>) attributes {dimension_semantics = [#tpu.dimension_semantics<parallel>, #tpu.dimension_semantics<parallel>], iteration_bounds = array<i64: 2, 1>, scalar_prefetch = 0 : i64, scratch_operands = 0 : i64, tpu.core_type = #tpu.core_type<tc>, window_params = [{transform_indices = @transform_0, window_bounds = array<i64: 1, 8, 256>}, {pipeline_mode = #tpu.pipeline_mode<synchronous>, transform_indices = @transform_1, window_bounds = array<i64: 3, 8, 8>}, {pipeline_mode = #tpu.pipeline_mode<synchronous>, transform_indices = @transform_2, window_bounds = array<i64: 3, 8, 1>}, {transform_indices = @transform_3, window_bounds = array<i64: 1, 8, 256>}]} {
    %c0 = arith.constant 0 : index
    %c0_0 = arith.constant 0 : index
    %c0_1 = arith.constant 0 : index
    %0 = vector.load %arg2[%c0, %c0_0, %c0_1] : memref<1x8x256xf32, #tpu.memory_space<vmem>>, vector<1x8x256xf32>
    %1 = vector.shape_cast %0 : vector<1x8x256xf32> to vector<8x256xf32>
    %2 = arith.truncf %1 : vector<8x256xf32> to vector<8x256xbf16>
    %c0_2 = arith.constant 0 : index
    %c0_3 = arith.constant 0 : index
    %c0_4 = arith.constant 0 : index
    %3 = vector.load %arg3[%c0_2, %c0_3, %c0_4] : memref<3x8x8xbf16, #tpu.memory_space<vmem>>, vector<1x8x8xbf16>
    %4 = vector.shape_cast %3 : vector<1x8x8xbf16> to vector<8x8xbf16>
    %c0_5 = arith.constant 0 : index
    %c0_6 = arith.constant 0 : index
    %c0_7 = arith.constant 0 : index
    %5 = vector.load %arg4[%c0_5, %c0_6, %c0_7] : memref<3x8x1xf32, #tpu.memory_space<vmem>>, vector<1x8x1xf32>
    %6 = vector.shape_cast %5 : vector<1x8x1xf32> to vector<8x1xf32>
    %cst = arith.constant dense<0.000000e+00> : vector<8x256xf32>
    %7 = tpu.matmul %4, %2, %cst {dimension_numbers = #tpu.dot_dimension_numbers<[1], [0], [0], [1], [0, 0, 1, 1], [], []>} : vector<8x8xbf16>, vector<8x256xbf16>, vector<8x256xf32> -> vector<8x256xf32>
    %8 = vector.broadcast %6 : vector<8x1xf32> to vector<8x256xf32>
    %9 = arith.addf %7, %8 : vector<8x256xf32>
    %cst_8 = arith.constant 0.000000e+00 : f32
    %10 = vector.broadcast %cst_8 : f32 to vector<8x256xf32>
    %11 = arith.maximumf %9, %10 : vector<8x256xf32>
    %12 = arith.truncf %11 : vector<8x256xf32> to vector<8x256xbf16>
    %c1 = arith.constant 1 : index
    %c0_9 = arith.constant 0 : index
    %c0_10 = arith.constant 0 : index
    %13 = vector.load %arg3[%c1, %c0_9, %c0_10] : memref<3x8x8xbf16, #tpu.memory_space<vmem>>, vector<1x8x8xbf16>
    %14 = vector.shape_cast %13 : vector<1x8x8xbf16> to vector<8x8xbf16>
    %c1_11 = arith.constant 1 : index
    %c0_12 = arith.constant 0 : index
    %c0_13 = arith.constant 0 : index
    %15 = vector.load %arg4[%c1_11, %c0_12, %c0_13] : memref<3x8x1xf32, #tpu.memory_space<vmem>>, vector<1x8x1xf32>
    %16 = vector.shape_cast %15 : vector<1x8x1xf32> to vector<8x1xf32>
    %cst_14 = arith.constant dense<0.000000e+00> : vector<8x256xf32>
    %17 = tpu.matmul %14, %12, %cst_14 {dimension_numbers = #tpu.dot_dimension_numbers<[1], [0], [0], [1], [0, 0, 1, 1], [], []>} : vector<8x8xbf16>, vector<8x256xbf16>, vector<8x256xf32> -> vector<8x256xf32>
    %18 = vector.broadcast %16 : vector<8x1xf32> to vector<8x256xf32>
    %19 = arith.addf %17, %18 : vector<8x256xf32>
    %cst_15 = arith.constant 0.000000e+00 : f32
    %20 = vector.broadcast %cst_15 : f32 to vector<8x256xf32>
    %21 = arith.maximumf %19, %20 : vector<8x256xf32>
    %22 = arith.truncf %21 : vector<8x256xf32> to vector<8x256xbf16>
    %c2 = arith.constant 2 : index
    %c0_16 = arith.constant 0 : index
    %c0_17 = arith.constant 0 : index
    %23 = vector.load %arg3[%c2, %c0_16, %c0_17] : memref<3x8x8xbf16, #tpu.memory_space<vmem>>, vector<1x8x8xbf16>
    %24 = vector.shape_cast %23 : vector<1x8x8xbf16> to vector<8x8xbf16>
    %c2_18 = arith.constant 2 : index
    %c0_19 = arith.constant 0 : index
    %c0_20 = arith.constant 0 : index
    %25 = vector.load %arg4[%c2_18, %c0_19, %c0_20] : memref<3x8x1xf32, #tpu.memory_space<vmem>>, vector<1x8x1xf32>
    %26 = vector.shape_cast %25 : vector<1x8x1xf32> to vector<8x1xf32>
    %cst_21 = arith.constant dense<0.000000e+00> : vector<8x256xf32>
    %27 = tpu.matmul %24, %22, %cst_21 {dimension_numbers = #tpu.dot_dimension_numbers<[1], [0], [0], [1], [0, 0, 1, 1], [], []>} : vector<8x8xbf16>, vector<8x256xbf16>, vector<8x256xf32> -> vector<8x256xf32>
    %28 = vector.broadcast %26 : vector<8x1xf32> to vector<8x256xf32>
    %29 = arith.addf %27, %28 : vector<8x256xf32>
    %cst_22 = arith.constant 0.000000e+00 : f32
    %30 = vector.broadcast %cst_22 : f32 to vector<8x256xf32>
    %31 = arith.maximumf %29, %30 : vector<8x256xf32>
    %32 = arith.truncf %31 : vector<8x256xf32> to vector<8x256xbf16>
    %33 = arith.extf %32 : vector<8x256xbf16> to vector<8x256xf32>
    %c0_23 = arith.constant 0 : index
    %c0_24 = arith.constant 0 : index
    %c0_25 = arith.constant 0 : index
    %34 = vector.load %arg5[%c0_23, %c0_24, %c0_25] : memref<1x8x256xf32, #tpu.memory_space<vmem>>, vector<1x8x256xf32>
    %35 = vector.shape_cast %34 : vector<1x8x256xf32> to vector<8x256xf32>
    %36 = vector.shape_cast %33 : vector<8x256xf32> to vector<1x8x256xf32>
    tpu.vector_store %arg5[%c0_23, %c0_24, %c0_25], %36 {strides = array<i32>} : memref<1x8x256xf32, #tpu.memory_space<vmem>>, vector<1x8x256xf32>,
    return
  }
  func.func @transform_0(%arg0: i32, %arg1: i32) -> (i32, i32, i32) {
    %c0_i32 = arith.constant 0 : i32
    %c0_i32_0 = arith.constant 0 : i32
    return %arg0, %c0_i32, %arg1 : i32, i32, i32
  }
  func.func @transform_1(%arg0: i32, %arg1: i32) -> (i32, i32, i32) {
    %c0_i32 = arith.constant 0 : i32
    %c0_i32_0 = arith.constant 0 : i32
    %c0_i32_1 = arith.constant 0 : i32
    %c0_i32_2 = arith.constant 0 : i32
    return %c0_i32, %c0_i32_0, %c0_i32_1 : i32, i32, i32
  }
  func.func @transform_2(%arg0: i32, %arg1: i32) -> (i32, i32, i32) {
    %c0_i32 = arith.constant 0 : i32
    %c0_i32_0 = arith.constant 0 : i32
    %c0_i32_1 = arith.constant 0 : i32
    %c0_i32_2 = arith.constant 0 : i32
    return %c0_i32, %c0_i32_0, %c0_i32_1 : i32, i32, i32
  }
  func.func @transform_3(%arg0: i32, %arg1: i32) -> (i32, i32, i32) {
    %c0_i32 = arith.constant 0 : i32
    %c0_i32_0 = arith.constant 0 : i32
    return %arg0, %c0_i32, %arg1 : i32, i32, i32
  }
}

</mosaic_0001>

<llo_original>
// kernel: multi_input_seq.1
$region0: #{multi_input_seq.1}
  #allocation0 [shape = 'u32[]', space=smem, size = 0x4, offset = 0x4, fixed_abs, tag = 'smem constant byte address 0x4 - core index']
  #allocation1 [shape = 'u32[144,128]{1,0:T(1,128)}', space=vmem, size = 0x12000, scoped, tag = 'internal scratch']
  %s0 = inlined_call_operand.vmem [shape: f32[2,8,256], index: 0, kind: input, shape index: {}]
  %s1 = inlined_call_operand.vmem [shape: bf16[3,8,8], index: 1, kind: input, shape index: {}]
  %s2 = inlined_call_operand.vmem [shape: f32[3,8,1], index: 2, kind: input, shape index: {}]
  %s3 = inlined_call_operand.vmem [shape: f32[2,8,256], index: 3, kind: output, shape index: {}]
  %s4 = sld [smem:[#allocation0]]
  $region45: #{multi_input_seq.1} parent=0
    _
  %s6 = ssub.s32 1, %s4
  %s7 = scalar_select 0, %s6, %s4
  loop: start=0, step=1, limit=4
  $region2: #{multi_input_seq.1} parent=0 // loop_pre_header
    _
  $region3: #{multi_input_seq.1} parent=0 // loop_header
    %s9 = sphi 0, %s13
    %p10 = scmp.ge.s32.totalorder %s9, 4
    %s16 = sphi 0, %s28
    %s17 = sphi 0, %s24
    %s18 = sphi 0, %s16
    %s19 = sphi 0, %s17
    %s20 = sphi 0, %s18
    %s21 = sphi 0, %s19
    %s33 = sphi 0, %s35
    %s36 = sphi 0, %s33
    %s37 = sphi 0, %s36
    %s53 = sphi 0, %s37
    %s57 = sphi 0, %s57
    %s59 = sphi 0, %s57
    %s60 = sphi 0, %s59
    %s74 = sphi 0, %s60
    %s78 = sphi 0, %s78
    %s80 = sphi 0, %s78
    %s81 = sphi 0, %s80
    %s95 = sphi 0, %s81
    %s103 = sphi 0, %s105
    %s106 = sphi 0, %s103
    %s107 = sphi 0, %s106
    %s123 = sphi 0, %s107
  $region4: #{multi_input_seq.1} parent=0 // loop_header_branch
    %12 = sbr.rel (%p10) target = $region8
  $region5: #{multi_input_seq.1} parent=0 // loop_body
    %s14 = ssub.s32 %s9, 1
    %s15 = ssub.s32 %s9, 2
    %s22 = sadd.s32 1, %s17
    %p23 = scmp.ge.s32.totalorder %s22, 1
    %s24 = scalar_select %p23, 0, %s22
    %s25 = sadd.s32 1, %s16
    %s26 = scalar_select %p23, %s25, %s16
    %p27 = scmp.ge.s32.totalorder %s26, 2
    %s28 = scalar_select %p27, 0, %s26
    %s29 = ssub.s32 %s16, %s28
    %s30 = ssub.s32 %s17, %s24
    %s31 = sor.u32 %s29, %s30
    %p32 = scmp.eq.s32.totalorder %s31, 0
    %s34 = sadd.s32 %s33, 1
    %s35 = scalar_select %p32, %s33, %s34
    %p38 = pneg %p32
    %p39 = scmp.eq.s32.totalorder %s9, 1
    %p40 = por %p38, %p39
    %p41 = scmp.ne.s32.totalorder %s33, %s36
    %p42 = scmp.eq.s32.totalorder %s9, 0
    %p43 = por %p41, %p42
    %p44 = scmp.ne.s32.totalorder %s33, %s36
    %p45 = scmp.eq.s32.totalorder %s14, 1
    %p46 = por %p44, %p45
    %p47 = scmp.ne.s32.totalorder %s36, %s37
    %p48 = scmp.eq.s32.totalorder %s14, 0
    %p49 = por %p47, %p48
    %p50 = scmp.ne.s32.totalorder %s36, %s37
    %p51 = scmp.eq.s32.totalorder %s15, 1
    %p52 = por %p50, %p51
    %p54 = scmp.ne.s32.totalorder %s37, %s53
    %p55 = scmp.eq.s32.totalorder %s15, 0
    %p56 = por %p54, %p55
    %s58 = sadd.s32 %s57, 1
    %p61 = scmp.eq.s32.totalorder %s9, 1
    %p62 = scmp.ne.s32.totalorder %s57, %s59
    %p63 = scmp.eq.s32.totalorder %s9, 0
    %p64 = por %p62, %p63
    %p65 = scmp.ne.s32.totalorder %s57, %s59
    %p66 = scmp.eq.s32.totalorder %s14, 1
    %p67 = por %p65, %p66
    %p68 = scmp.ne.s32.totalorder %s59, %s60
    %p69 = scmp.eq.s32.totalorder %s14, 0
    %p70 = por %p68, %p69
    %p71 = scmp.ne.s32.totalorder %s59, %s60
    %p72 = scmp.eq.s32.totalorder %s15, 1
    %p73 = por %p71, %p72
    %p75 = scmp.ne.s32.totalorder %s60, %s74
    %p76 = scmp.eq.s32.totalorder %s15, 0
    %p77 = por %p75, %p76
    %s79 = sadd.s32 %s78, 1
    %p82 = scmp.eq.s32.totalorder %s9, 1
    %p83 = scmp.ne.s32.totalorder %s78, %s80
    %p84 = scmp.eq.s32.totalorder %s9, 0
    %p85 = por %p83, %p84
    %p86 = scmp.ne.s32.totalorder %s78, %s80
    %p87 = scmp.eq.s32.totalorder %s14, 1
    %p88 = por %p86, %p87
    %p89 = scmp.ne.s32.totalorder %s80, %s81
    %p90 = scmp.eq.s32.totalorder %s14, 0
    %p91 = por %p89, %p90
    %p92 = scmp.ne.s32.totalorder %s80, %s81
    %p93 = scmp.eq.s32.totalorder %s15, 1
    %p94 = por %p92, %p93
    %p96 = scmp.ne.s32.totalorder %s81, %s95
    %p97 = scmp.eq.s32.totalorder %s15, 0
    %p98 = por %p96, %p97
    %s99 = ssub.s32 %s16, %s28
    %s100 = ssub.s32 %s17, %s24
    %s101 = sor.u32 %s99, %s100
    %p102 = scmp.eq.s32.totalorder %s101, 0
    %s104 = sadd.s32 %s103, 1
    %s105 = scalar_select %p102, %s103, %s104
    %p108 = pneg %p102
    %p109 = scmp.eq.s32.totalorder %s9, 1
    %p110 = por %p108, %p109
    %p111 = scmp.ne.s32.totalorder %s103, %s106
    %p112 = scmp.eq.s32.totalorder %s9, 0
    %p113 = por %p111, %p112
    %p114 = scmp.ne.s32.totalorder %s103, %s106
    %p115 = scmp.eq.s32.totalorder %s14, 1
    %p116 = por %p114, %p115
    %p117 = scmp.ne.s32.totalorder %s106, %s107
    %p118 = scmp.eq.s32.totalorder %s14, 0
    %p119 = por %p117, %p118
    %p120 = scmp.ne.s32.totalorder %s106, %s107
    %p121 = scmp.eq.s32.totalorder %s15, 1
    %p122 = por %p120, %p121
    %p124 = scmp.ne.s32.totalorder %s107, %s123
    %p125 = scmp.eq.s32.totalorder %s15, 0
    %p126 = por %p124, %p125
    %p127 = scmp.le.s32.totalorder 1, %s9
    %p128 = scmp.lt.s32.totalorder %s9, 3
    %p129 = pnand %p127, %p128
    %p130 = pneg %p129
    // Predicated region
    $region9: #{multi_input_seq.1} parent=5 // pred_check
      _
    $region10: #{multi_input_seq.1} parent=5 // pred_check_branch
      %132 = sbr.rel (%p129) target = $region12
    $region11: #{multi_input_seq.1} parent=5 // pred_region
      %s133 = ssub.s32 %s9, 1
      // Predicated region
      $region13: #{multi_input_seq.1} parent=11 // pred_check
        %p134 = pneg %p70
      $region14: #{multi_input_seq.1} parent=11 // pred_check_branch
        %136 = sbr.rel (%p134) target = $region16
      $region15: #{multi_input_seq.1} parent=11 // pred_region
        _
      $region16: #{multi_input_seq.1} parent=11 // pred_fallthru
        _
      // Predicated region
      $region17: #{multi_input_seq.1} parent=11 // pred_check
        %p137 = pneg %p91
      $region18: #{multi_input_seq.1} parent=11 // pred_check_branch
        %139 = sbr.rel (%p137) target = $region20
      $region19: #{multi_input_seq.1} parent=11 // pred_region
        _
      $region20: #{multi_input_seq.1} parent=11 // pred_fallthru
        _
    $region12: #{multi_input_seq.1} parent=5 // pred_fallthru
      _
    %p140 = scmp.lt.s32.totalorder %s9, 2
    // Predicated region
    $region21: #{multi_input_seq.1} parent=5 // pred_check
      %p141 = pneg %p140
    $region22: #{multi_input_seq.1} parent=5 // pred_check_branch
      %143 = sbr.rel (%p141) target = $region24
    $region23: #{multi_input_seq.1} parent=5 // pred_region
      // Predicated region
      $region25: #{multi_input_seq.1} parent=23 // pred_check
        %p144 = pneg %p43
      $region26: #{multi_input_seq.1} parent=23 // pred_check_branch
        %146 = sbr.rel (%p144) target = $region28
      $region27: #{multi_input_seq.1} parent=23 // pred_region
        %s147 = smul.u32 2, %s17
        %p148 = scmp.lt.s32.totalorder %s16, 1
        %s149 = scalar_select %p148, %s16, 1
        %p150 = scmp.lt.s32.totalorder %s147, 1
        %s151 = scalar_select %p150, %s147, 1
        %s152 = smul.addr %s149, 2
        %s153 = sadd.s32 %s151, %s152
        %s154 = smul.addr %s153, 8
        %s155 = scalar_lea.vmem %s0, %s154
        %s156 = smul.u32 2, %s17
      $region28: #{multi_input_seq.1} parent=23 // pred_fallthru
        _
    $region24: #{multi_input_seq.1} parent=5 // pred_fallthru
      _
    %p157 = scmp.le.s32.totalorder 1, %s9
    %p158 = scmp.lt.s32.totalorder %s9, 3
    %p159 = pnand %p157, %p158
    %p160 = pneg %p159
    // Predicated region
    $region29: #{multi_input_seq.1} parent=5 // pred_check
      _
    $region30: #{multi_input_seq.1} parent=5 // pred_check_branch
      %162 = sbr.rel (%p159) target = $region32
    $region31: #{multi_input_seq.1} parent=5 // pred_region
      %s163 = ssub.s32 %s9, 1
      %s164 = smul.u32 2, %s19
      %p165 = scmp.lt.s32.totalorder %s18, 1
      %s166 = scalar_select %p165, %s18, 1
      %p167 = scmp.lt.s32.totalorder %s164, 1
      %s168 = scalar_select %p167, %s164, 1
      %s169 = smul.addr %s166, 2
      %s170 = sadd.s32 %s168, %s169
      %s171 = smul.addr %s170, 8
      %s172 = scalar_lea.vmem %s0, %s171
      %p173 = pneg %p49
      %p174 = pneg %p46
      %p175 = pneg %p70
      %p176 = pneg %p67
      %p177 = pneg %p91
      %p178 = pneg %p88
      %p179 = pneg %p119
      %p180 = pneg %p116
      %s181 = smul.u32 2, %s19
      %p182 = scmp.lt.s32.totalorder %s18, 1
      %s183 = scalar_select %p182, %s18, 1
      %p184 = scmp.lt.s32.totalorder %s181, 1
      %s185 = scalar_select %p184, %s181, 1
      %s186 = smul.addr %s183, 2
      %s187 = sadd.s32 %s185, %s186
      %s188 = smul.addr %s187, 8
      %s189 = scalar_lea.vmem %s3, %s188
      %s190 = smul.u32 2, %s19
      %p191 = scmp.lt.s32.totalorder %s18, 1
      %s192 = scalar_select %p191, %s18, 1
      %p193 = scmp.lt.s32.totalorder %s190, 1
      %s194 = scalar_select %p193, %s190, 1
      %s195 = smul.addr %s192, 2
      %s196 = sadd.s32 %s194, %s195
      %s197 = smul.addr %s196, 8
      %s198 = scalar_lea.vmem %s0, %s197
      %s199 = smul.u32 2, %s19
      %s200 = smul.u32 2, %s19
      %p201 = scmp.lt.s32.totalorder %s18, 1
      %s202 = scalar_select %p201, %s18, 1
      %p203 = scmp.lt.s32.totalorder %s200, 1
      %s204 = scalar_select %p203, %s200, 1
      %s205 = smul.addr %s202, 2
      %s206 = sadd.s32 %s204, %s205
      %s207 = smul.addr %s206, 8
      %s208 = scalar_lea.vmem %s3, %s207
      %s209 = smul.u32 2, %s19
      %v211 = vld [vmem:[%s198] sm:$0xff]
      %v212 = vld [vmem:[%s198 + $0x8] sm:$0xff]
      %v213 = vpack.c.bf16 %v211, %v211
      %v214 = vpack.c.bf16 %v212, %v212
      %v215 = vld [vmem:[%s1] sm:$0xf]
      %v216 = vld [vmem:[%s2] sm:$0xff]
      %218 = vset.pattern.permute.xlu0 0
      %219 = vperm.xlu0 %218, %v216
      %v220 = vpop.permute.xlu0 %219
      %vm222 = vcmask 64512
      %v224 = vsel %vm222, %v215, 0
      %vm226 = vcmask 1043456
      %v228 = vsel %vm226, %v213, 0
      %v231 = vsel %vm226, %v214, 0
      %233 = vmatprep.subr.bf16.mxu0 0
      %234 = vmatpush1.bf16.msra.mxu0 0
      %235 = vmatprep.subr.bf16.mxu0 0
      %236 = vmatpush1.bf16.msra.mxu0 0
      %237 = vmatprep.subr.bf16.mxu0 0
      %238 = vmatpush1.bf16.msra.mxu0 0
      %239 = vmatprep.subr.bf16.mxu0 0
      %240 = vmatpush1.bf16.msra.mxu0 0
      %241 = vmatprep.subr.bf16.mxu0 0
      %242 = vmatpush1.bf16.msra.mxu0 0
      %243 = vmatprep.subr.bf16.mxu0 0
      %244 = vmatpush1.bf16.msra.mxu0 0
      %245 = vmatprep.subr.bf16.mxu0 0
      %246 = vmatpush1.bf16.msra.mxu0 0
      %247 = vmatprep.subr.bf16.mxu0 %v231
      %248 = vmatpush1.bf16.msra.mxu0 %v228
      %249 = vmatprep.subr.bf16.mxu0 0
      %250 = vmatpush2.bf16.msra.mxu0 0
      %251 = vmatprep.subr.bf16.mxu0 0
      %252 = vmatpush2.bf16.msra.mxu0 0
      %253 = vmatprep.subr.bf16.mxu0 0
      %254 = vmatpush2.bf16.msra.mxu0 0
      %255 = vmatprep.subr.bf16.mxu0 0
      %256 = vmatpush2.bf16.msra.mxu0 0
      %257 = vmatprep.subr.bf16.mxu0 0
      %258 = vmatpush2.bf16.msra.mxu0 0
      %259 = vmatprep.subr.bf16.mxu0 0
      %260 = vmatpush2.bf16.msra.mxu0 0
      %261 = vmatprep.subr.bf16.mxu0 0
      %262 = vmatpush2.bf16.msra.mxu0 0
      %263 = vmatprep.subr.bf16.mxu0 0
      %264 = vmatpush2.bf16.msra.mxu0 0
      %265 = vmatprep.mubr.bf16.mxu0 0
      %266 = vmatmul.mubr.bf16.gmra.mxu0 %v224
      %v267 = vpop.f32.mrf.mxu0
      %v268 = vadd.f32 %v220, %v267
      %v269 = vpop.f32.mrf.mxu0
      %v270 = vadd.f32 %v220, %v269
      %v271 = vpop.f32.mrf.mxu0
      %v272 = vpop.f32.mrf.mxu0
      %273 = vdwg.mxu0
      %v274 = vmax.f32 %v268, 0.0
      %v275 = vmax.f32 %v270, 0.0
      %v276 = vpack.c.bf16 %v274, %v274
      %v277 = vpack.c.bf16 %v275, %v275
      %s278 = scalar_lea.vmem %s1, 4
      %v279 = vld [vmem:[%s278] sm:$0xf]
      %s280 = scalar_lea.vmem %s2, 8
      %v281 = vld [vmem:[%s280] sm:$0xff]
      %283 = vset.pattern.permute.xlu0 0
      %284 = vperm.xlu0 %283, %v281
      %v285 = vpop.permute.xlu0 %284
      %v288 = vsel %vm222, %v279, 0
      %v291 = vsel %vm226, %v276, 0
      %v294 = vsel %vm226, %v277, 0
      %296 = vmatprep.subr.bf16.mxu0 0
      %297 = vmatpush1.bf16.msra.mxu0 0
      %298 = vmatprep.subr.bf16.mxu0 0
      %299 = vmatpush1.bf16.msra.mxu0 0
      %300 = vmatprep.subr.bf16.mxu0 0
      %301 = vmatpush1.bf16.msra.mxu0 0
      %302 = vmatprep.subr.bf16.mxu0 0
      %303 = vmatpush1.bf16.msra.mxu0 0
      %304 = vmatprep.subr.bf16.mxu0 0
      %305 = vmatpush1.bf16.msra.mxu0 0
      %306 = vmatprep.subr.bf16.mxu0 0
      %307 = vmatpush1.bf16.msra.mxu0 0
      %308 = vmatprep.subr.bf16.mxu0 0
      %309 = vmatpush1.bf16.msra.mxu0 0
      %310 = vmatprep.subr.bf16.mxu0 %v294
      %311 = vmatpush1.bf16.msra.mxu0 %v291
      %312 = vmatprep.subr.bf16.mxu0 0
      %313 = vmatpush2.bf16.msra.mxu0 0
      %314 = vmatprep.subr.bf16.mxu0 0
      %315 = vmatpush2.bf16.msra.mxu0 0
      %316 = vmatprep.subr.bf16.mxu0 0
      %317 = vmatpush2.bf16.msra.mxu0 0
      %318 = vmatprep.subr.bf16.mxu0 0
      %319 = vmatpush2.bf16.msra.mxu0 0
      %320 = vmatprep.subr.bf16.mxu0 0
      %321 = vmatpush2.bf16.msra.mxu0 0
      %322 = vmatprep.subr.bf16.mxu0 0
      %323 = vmatpush2.bf16.msra.mxu0 0
      %324 = vmatprep.subr.bf16.mxu0 0
      %325 = vmatpush2.bf16.msra.mxu0 0
      %326 = vmatprep.subr.bf16.mxu0 0
      %327 = vmatpush2.bf16.msra.mxu0 0
      %328 = vmatprep.mubr.bf16.mxu0 0
      %329 = vmatmul.mubr.bf16.gmra.mxu0 %v288
      %v330 = vpop.f32.mrf.mxu0
      %v331 = vadd.f32 %v285, %v330
      %v332 = vpop.f32.mrf.mxu0
      %v333 = vadd.f32 %v285, %v332
      %v334 = vpop.f32.mrf.mxu0
      %v335 = vpop.f32.mrf.mxu0
      %336 = vdwg.mxu0
      %v337 = vmax.f32 %v331, 0.0
      %v338 = vmax.f32 %v333, 0.0
      %v339 = vpack.c.bf16 %v337, %v337
      %v340 = vpack.c.bf16 %v338, %v338
      %s341 = scalar_lea.vmem %s1, 8
      %v342 = vld [vmem:[%s341] sm:$0xf]
      %s343 = scalar_lea.vmem %s2, 16
      %v344 = vld [vmem:[%s343] sm:$0xff]
      %346 = vset.pattern.permute.xlu0 0
      %347 = vperm.xlu0 %346, %v344
      %v348 = vpop.permute.xlu0 %347
      %v351 = vsel %vm222, %v342, 0
      %v354 = vsel %vm226, %v339, 0
      %v357 = vsel %vm226, %v340, 0
      %359 = vmatprep.subr.bf16.mxu0 0
      %360 = vmatpush1.bf16.msra.mxu0 0
      %361 = vmatprep.subr.bf16.mxu0 0
      %362 = vmatpush1.bf16.msra.mxu0 0
      %363 = vmatprep.subr.bf16.mxu0 0
      %364 = vmatpush1.bf16.msra.mxu0 0
      %365 = vmatprep.subr.bf16.mxu0 0
      %366 = vmatpush1.bf16.msra.mxu0 0
      %367 = vmatprep.subr.bf16.mxu0 0
      %368 = vmatpush1.bf16.msra.mxu0 0
      %369 = vmatprep.subr.bf16.mxu0 0
      %370 = vmatpush1.bf16.msra.mxu0 0
      %371 = vmatprep.subr.bf16.mxu0 0
      %372 = vmatpush1.bf16.msra.mxu0 0
      %373 = vmatprep.subr.bf16.mxu0 %v357
      %374 = vmatpush1.bf16.msra.mxu0 %v354
      %375 = vmatprep.subr.bf16.mxu0 0
      %376 = vmatpush2.bf16.msra.mxu0 0
      %377 = vmatprep.subr.bf16.mxu0 0
      %378 = vmatpush2.bf16.msra.mxu0 0
      %379 = vmatprep.subr.bf16.mxu0 0
      %380 = vmatpush2.bf16.msra.mxu0 0
      %381 = vmatprep.subr.bf16.mxu0 0
      %382 = vmatpush2.bf16.msra.mxu0 0
      %383 = vmatprep.subr.bf16.mxu0 0
      %384 = vmatpush2.bf16.msra.mxu0 0
      %385 = vmatprep.subr.bf16.mxu0 0
      %386 = vmatpush2.bf16.msra.mxu0 0
      %387 = vmatprep.subr.bf16.mxu0 0
      %388 = vmatpush2.bf16.msra.mxu0 0
      %389 = vmatprep.subr.bf16.mxu0 0
      %390 = vmatpush2.bf16.msra.mxu0 0
      %391 = vmatprep.mubr.bf16.mxu0 0
      %392 = vmatmul.mubr.bf16.gmra.mxu0 %v351
      %v393 = vpop.f32.mrf.mxu0
      %v394 = vadd.f32 %v348, %v393
      %v395 = vpop.f32.mrf.mxu0
      %v396 = vadd.f32 %v348, %v395
      %v397 = vpop.f32.mrf.mxu0
      %v398 = vpop.f32.mrf.mxu0
      %399 = vdwg.mxu0
      %v400 = vmax.f32 %v394, 0.0
      %v401 = vmax.f32 %v396, 0.0
      %v402 = vpack.c.bf16 %v400, %v400
      %v403 = vpack.c.bf16 %v401, %v401
      %v404 = vunpack.c.l.bf16 %v402
      %v405 = vunpack.c.l.bf16 %v403
      %406 = vst [vmem:[%s208] sm:$0xff] %v404
      %407 = vst [vmem:[%s208 + $0x8] sm:$0xff] %v405
      %s408 = smul.u32 2, %s19
      %p409 = scmp.lt.s32.totalorder %s18, 1
      %s410 = scalar_select %p409, %s18, 1
      %p411 = scmp.lt.s32.totalorder %s408, 1
      %s412 = scalar_select %p411, %s408, 1
      %s413 = smul.addr %s410, 2
      %s414 = sadd.s32 %s412, %s413
      %s415 = smul.addr %s414, 8
      %s416 = scalar_lea.vmem %s3, %s415
      // Predicated region
      $region33: #{multi_input_seq.1} parent=31 // pred_check
        %p417 = pneg %p116
      $region34: #{multi_input_seq.1} parent=31 // pred_check_branch
        %419 = sbr.rel (%p417) target = $region36
      $region35: #{multi_input_seq.1} parent=31 // pred_region
        %s420 = smul.u32 2, %s19
      $region36: #{multi_input_seq.1} parent=31 // pred_fallthru
        _
    $region32: #{multi_input_seq.1} parent=5 // pred_fallthru
      _
    %p421 = scmp.le.s32.totalorder 2, %s9
    // Predicated region
    $region37: #{multi_input_seq.1} parent=5 // pred_check
      %p422 = pneg %p421
    $region38: #{multi_input_seq.1} parent=5 // pred_check_branch
      %424 = sbr.rel (%p422) target = $region40
    $region39: #{multi_input_seq.1} parent=5 // pred_region
      %s425 = ssub.s32 %s9, 2
      // Predicated region
      $region41: #{multi_input_seq.1} parent=39 // pred_check
        %p426 = pneg %p122
      $region42: #{multi_input_seq.1} parent=39 // pred_check_branch
        %428 = sbr.rel (%p426) target = $region44
      $region43: #{multi_input_seq.1} parent=39 // pred_region
        %s429 = smul.u32 2, %s21
        %p430 = scmp.lt.s32.totalorder %s20, 1
        %s431 = scalar_select %p430, %s20, 1
        %p432 = scmp.lt.s32.totalorder %s429, 1
        %s433 = scalar_select %p432, %s429, 1
        %s434 = smul.addr %s431, 2
        %s435 = sadd.s32 %s433, %s434
        %s436 = smul.addr %s435, 8
        %s437 = scalar_lea.vmem %s3, %s436
      $region44: #{multi_input_seq.1} parent=39 // pred_fallthru
        _
    $region40: #{multi_input_seq.1} parent=5 // pred_fallthru
      _
  $region6: #{multi_input_seq.1} parent=0 // loop_footer
    %s13 = sadd.s32 1, %s9
  $region7: #{multi_input_seq.1} parent=0 // loop_footer_branch
    %8 = sbr.rel target = $region3
  $region8: #{multi_input_seq.1} parent=0 // loop_exit
    _

</llo_original>
